<compile_context>
chip_gen: v7x
topology: tpu7x:2x2x1
jax: 0.10.0
libtpu: 0.0.40
codegen_flags: <defaults>
</compile_context>

<pallas_src>
import jax
import jax.numpy as jnp
from jax.experimental import pallas as pl
from jax.experimental.pallas import tpu as pltpu


def _round_up(x, m):
    return ((x + m - 1) // m) * m


def _linear_kernel(x_ref, w_ref, b_ref, o_ref):
    # x_ref: (tm, K)  w_ref: (K, N)  b_ref: (1, N)  o_ref: (tm, N)
    y = jnp.dot(x_ref[...], w_ref[...], preferred_element_type=jnp.float32)
    o_ref[...] = (y + b_ref[...]).astype(o_ref.dtype)


def linear_pallas_2d(x2d, w, b):
    """x2d: [M, dim_in], w: [dim_in, dim_out], b: [dim_out] -> [M, dim_out]."""
    M, K = x2d.shape
    N = w.shape[1]

    # One block if M is small; otherwise tile M (multiple of 8, up to 512)
    # and shard the M axis across cores ("parallel").
    tm = min(512, _round_up(M, 8))
    M_pad = _round_up(M, tm)
    if M_pad != M:
        x2d = jnp.pad(x2d, ((0, M_pad - M), (0, 0)))
    grid_m = M_pad // tm

    itemsize = jnp.dtype(x2d.dtype).itemsize
    cost = pl.CostEstimate(
        flops=2 * M_pad * K * N,
        transcendentals=0,
        bytes_accessed=(M_pad * K + K * N + M_pad * N + N) * itemsize,
    )

    out = pl.pallas_call(
        _linear_kernel,
        out_shape=jax.ShapeDtypeStruct((M_pad, N), x2d.dtype),
        grid=(grid_m,),
        in_specs=[
            pl.BlockSpec((tm, K), lambda i: (i, 0)),
            pl.BlockSpec((K, N), lambda i: (0, 0)),
            pl.BlockSpec((1, N), lambda i: (0, 0)),
        ],
        out_specs=pl.BlockSpec((tm, N), lambda i: (i, 0)),
        compiler_params=pltpu.CompilerParams(
            dimension_semantics=("parallel",),
        ),
        cost_estimate=cost,
    )(x2d, w, b.reshape(1, N))

    if M_pad != M:
        out = out[:M]
    return out


class LinearEmbedPallas:
    """Mirrors torch LinearEmbed: 8 Linear(dim_in, dim_out) layers are created,
    but only linear1 is used in forward (exactly as in the reference module)."""

    def __init__(self, dim_in=512, dim_out=128, key=jax.random.PRNGKey(0)):
        self.dim_in = dim_in
        self.dim_out = dim_out
        keys = jax.random.split(key, 16)
        bound = 1.0 / (dim_in ** 0.5)
        # Deterministic init mimicking nn.Linear's U(-1/sqrt(fan_in), 1/sqrt(fan_in)).
        # Stored as [dim_in, dim_out] (transposed vs torch's [dim_out, dim_in]).
        self.weights = [
            jax.random.uniform(keys[2 * i], (dim_in, dim_out),
                               minval=-bound, maxval=bound, dtype=jnp.float32)
            for i in range(8)
        ]
        self.biases = [
            jax.random.uniform(keys[2 * i + 1], (dim_out,),
                               minval=-bound, maxval=bound, dtype=jnp.float32)
            for i in range(8)
        ]

    def __call__(self, x):
        # x: [8, B, *spatial]; each slice is flattened per-batch to [B, dim_in]
        # (torch's x[i].view(x[i].shape[0], -1)).
        S = x.shape[0]
        B = x.shape[1]
        x_flat = x.reshape(S, B, -1)
        assert x_flat.shape[-1] == self.dim_in
        # Fuse all 8 slices into one matmul: (S*B, dim_in) @ (dim_in, dim_out).
        # Only linear1 (index 0) is used, exactly as in the PyTorch forward.
        out2d = linear_pallas_2d(x_flat.reshape(S * B, self.dim_in),
                                 self.weights[0], self.biases[0])
        out = out2d.reshape(S, B, self.dim_out)
        return [out[i] for i in range(S)]


if __name__ == "__main__":
    key = jax.random.PRNGKey(0)
    k_param, k_x = jax.random.split(key)

    dim_in, dim_out = 512, 128
    S, B = 8, 8                       # 8 slices (x[0]..x[7]), small batch
    spatial = (32, 16)                # flattens to 32*16 = 512 = dim_in

    model = LinearEmbedPallas(dim_in=dim_in, dim_out=dim_out, key=k_param)
    x = jax.random.normal(k_x, (S, B) + spatial, dtype=jnp.float32)

    outs = model(x)
    outs = [jax.block_until_ready(o) for o in outs]

    # Reference check in plain JAX (same: only linear1 applied to every slice).
    x_flat = x.reshape(S, B, -1)
    ref = jnp.einsum("sbk,kn->sbn", x_flat, model.weights[0]) + model.biases[0]
    for i in range(S):
        assert outs[i].shape == (B, dim_out)
        assert jnp.allclose(outs[i], ref[i], atol=1e-4, rtol=1e-4)

    print("KERNEL_OK")
</pallas_src>

<mosaic_0001>
module attributes {stable_mosaic.version = 11 : i64} {
  func.func @_linear_kernel(%arg0: i32, %arg1: memref<64x512xf32, #tpu.memory_space<vmem>>, %arg2: memref<512x128xf32, #tpu.memory_space<vmem>>, %arg3: memref<1x128xf32, #tpu.memory_space<vmem>>, %arg4: memref<64x128xf32, #tpu.memory_space<vmem>>) attributes {dimension_semantics = [#tpu.dimension_semantics<parallel>], iteration_bounds = array<i64: 1>, scalar_prefetch = 0 : i64, scratch_operands = 0 : i64, tpu.core_type = #tpu.core_type<tc>, window_params = [{transform_indices = @transform_0, window_bounds = array<i64: 64, 512>}, {pipeline_mode = #tpu.pipeline_mode<synchronous>, transform_indices = @transform_1, window_bounds = array<i64: 512, 128>}, {pipeline_mode = #tpu.pipeline_mode<synchronous>, transform_indices = @transform_2, window_bounds = array<i64: 1, 128>}, {transform_indices = @transform_3, window_bounds = array<i64: 64, 128>}]} {
    %c0 = arith.constant 0 : index
    %c0_0 = arith.constant 0 : index
    %0 = vector.load %arg1[%c0, %c0_0] : memref<64x512xf32, #tpu.memory_space<vmem>>, vector<64x512xf32>
    %c0_1 = arith.constant 0 : index
    %c0_2 = arith.constant 0 : index
    %1 = vector.load %arg2[%c0_1, %c0_2] : memref<512x128xf32, #tpu.memory_space<vmem>>, vector<512x128xf32>
    %cst = arith.constant dense<0.000000e+00> : vector<64x128xf32>
    %2 = tpu.matmul %0, %1, %cst {dimension_numbers = #tpu.dot_dimension_numbers<[1], [0], [0], [1], [0, 0, 1, 1], [], []>} : vector<64x512xf32>, vector<512x128xf32>, vector<64x128xf32> -> vector<64x128xf32>
    %c0_3 = arith.constant 0 : index
    %c0_4 = arith.constant 0 : index
    %3 = vector.load %arg3[%c0_3, %c0_4] : memref<1x128xf32, #tpu.memory_space<vmem>>, vector<1x128xf32>
    %4 = vector.broadcast %3 : vector<1x128xf32> to vector<64x128xf32>
    %5 = arith.addf %2, %4 : vector<64x128xf32>
    %c0_5 = arith.constant 0 : index
    %c0_6 = arith.constant 0 : index
    %6 = vector.load %arg4[%c0_5, %c0_6] : memref<64x128xf32, #tpu.memory_space<vmem>>, vector<64x128xf32>
    tpu.vector_store %arg4[%c0_5, %c0_6], %5 {strides = array<i32>} : memref<64x128xf32, #tpu.memory_space<vmem>>, vector<64x128xf32>,
    return
  }
  func.func @transform_0(%arg0: i32) -> (i32, i32) {
    %c0_i32 = arith.constant 0 : i32
    %c0_i32_0 = arith.constant 0 : i32
    return %arg0, %c0_i32 : i32, i32
  }
  func.func @transform_1(%arg0: i32) -> (i32, i32) {
    %c0_i32 = arith.constant 0 : i32
    %c0_i32_0 = arith.constant 0 : i32
    %c0_i32_1 = arith.constant 0 : i32
    return %c0_i32, %c0_i32_0 : i32, i32
  }
  func.func @transform_2(%arg0: i32) -> (i32, i32) {
    %c0_i32 = arith.constant 0 : i32
    %c0_i32_0 = arith.constant 0 : i32
    %c0_i32_1 = arith.constant 0 : i32
    return %c0_i32, %c0_i32_0 : i32, i32
  }
  func.func @transform_3(%arg0: i32) -> (i32, i32) {
    %c0_i32 = arith.constant 0 : i32
    %c0_i32_0 = arith.constant 0 : i32
    return %arg0, %c0_i32 : i32, i32
  }
}

</mosaic_0001>

<llo_original>
// kernel: tpu_custom_call.1
$region0: #{tpu_custom_call.1}
  #allocation0 [shape = 'u32[]', space=smem, size = 0x4, offset = 0x4, fixed_abs, tag = 'smem constant byte address 0x4 - core index']
  #allocation1 [shape = 'u32[144,128]{1,0:T(1,128)}', space=vmem, size = 0x12000, scoped, tag = 'internal scratch']
  %s0 = inlined_call_operand.hbm [shape: f32[64,512], index: 0, kind: input, shape index: {}]
  %s1 = inlined_call_operand.hbm [shape: f32[512,128], index: 1, kind: input, shape index: {}]
  %s2 = inlined_call_operand.vmem [shape: f32[1,128], index: 2, kind: input, shape index: {}]
  %s3 = inlined_call_operand.hbm [shape: f32[64,128], index: 3, kind: output, shape index: {}]
  %s4 = sld [smem:[#allocation0]]
  $region30: #{tpu_custom_call.1} parent=0
    _
  %s6 = ssub.s32 1, %s4
  %s7 = scalar_select 0, %s6, %s4
  $region1: #{tpu_custom_call.1} parent=0
    #allocation2 [shape = 'u8[131072]{0}', space=vmem, size = 0x20000, scoped, tag = 'input window, operand 0, single buffered']
    #allocation3 [shape = 's32[1]{0}', space=sflag, size = 0x4, scoped, tag = 'scoped memory for tpu_custom_call.1']
    #allocation4 [shape = 's32[1]{0}', space=sflag, size = 0x4, scoped, tag = 'scoped memory for tpu_custom_call.1']
    #allocation5 [shape = 'u8[262144]{0}', space=vmem, size = 0x40000, scoped, tag = 'input window, operand 1, single buffered']
    #allocation6 [shape = 's32[1]{0}', space=sflag, size = 0x4, scoped, tag = 'scoped memory for tpu_custom_call.1']
    #allocation7 [shape = 'u8[32768]{0}', space=vmem, size = 0x8000, scoped, tag = 'output window, operand 0, single buffered']
    %8 = vsyncpa [#allocation3], 0
    %9 = vsyncpa [#allocation6], 0
    %10 = vsyncpa [#allocation4], 0
    // Predicated region
    $region2: #{tpu_custom_call.1} parent=1 // pred_check
      _
    $region3: #{tpu_custom_call.1} parent=1 // pred_check_branch
      %12 = sbr.rel (0) target = $region5
    $region4: #{tpu_custom_call.1} parent=1 // pred_region
      %s14 = ssub.s32 4096, 4096
      %15 = vsyncadd [#allocation3], %s14
      %s16 = sshll.u32 [#allocation2], 4
      %s17 = int_to_ptr.vmem [resolvable:$true] %s16
      %22 = dma.hbm_to_vmem [thread:$0]  %s0, 4096, %s17, [#allocation3], 512, 512, 32
    $region5: #{tpu_custom_call.1} parent=1 // pred_fallthru
      _
    // Predicated region
    $region6: #{tpu_custom_call.1} parent=1 // pred_check
      _
    $region7: #{tpu_custom_call.1} parent=1 // pred_check_branch
      %24 = sbr.rel (0) target = $region9
    $region8: #{tpu_custom_call.1} parent=1 // pred_region
      %s26 = ssub.s32 8192, 8192
      %27 = vsyncadd [#allocation6], %s26
      %s28 = sshll.u32 [#allocation5], 4
      %s29 = int_to_ptr.vmem [resolvable:$true] %s28
      %34 = dma.hbm_to_vmem [thread:$0]  %s1, 8192, %s29, [#allocation6], 128, 128, 8
    $region9: #{tpu_custom_call.1} parent=1 // pred_fallthru
      _
    // Predicated region
    $region10: #{tpu_custom_call.1} parent=1 // pred_check
      _
    $region11: #{tpu_custom_call.1} parent=1 // pred_check_branch
      %36 = sbr.rel (0) target = $region13
    $region12: #{tpu_custom_call.1} parent=1 // pred_region
      _
    $region13: #{tpu_custom_call.1} parent=1 // pred_fallthru
      _
    // Predicated region
    $region14: #{tpu_custom_call.1} parent=1 // pred_check
      _
    $region15: #{tpu_custom_call.1} parent=1 // pred_check_branch
      %38 = sbr.rel (0) target = $region17
    $region16: #{tpu_custom_call.1} parent=1 // pred_region
      %39 = dma.done [#allocation3], 4096
    $region17: #{tpu_custom_call.1} parent=1 // pred_fallthru
      _
    // Predicated region
    $region18: #{tpu_custom_call.1} parent=1 // pred_check
      _
    $region19: #{tpu_custom_call.1} parent=1 // pred_check_branch
      %41 = sbr.rel (0) target = $region21
    $region20: #{tpu_custom_call.1} parent=1 // pred_region
      %42 = dma.done [#allocation6], 8192
    $region21: #{tpu_custom_call.1} parent=1 // pred_fallthru
      _
    %v43 = vld [vmem:[#allocation2] sm:$0xff]
    %v44 = vld [vmem:[#allocation2 + $0x8] sm:$0xff]
    %v45 = vld [vmem:[#allocation2 + $0x10] sm:$0xff]
    %v46 = vld [vmem:[#allocation2 + $0x18] sm:$0xff]
    %v47 = vld [vmem:[#allocation2 + $0x20] sm:$0xff]
    %v48 = vld [vmem:[#allocation2 + $0x28] sm:$0xff]
    %v49 = vld [vmem:[#allocation2 + $0x30] sm:$0xff]
    %v50 = vld [vmem:[#allocation2 + $0x38] sm:$0xff]
    %v51 = vld [vmem:[#allocation2 + $0x40] sm:$0xff]
    %v52 = vld [vmem:[#allocation2 + $0x48] sm:$0xff]
    %v53 = vld [vmem:[#allocation2 + $0x50] sm:$0xff]
    %v54 = vld [vmem:[#allocation2 + $0x58] sm:$0xff]
    %v55 = vld [vmem:[#allocation2 + $0x60] sm:$0xff]
    %v56 = vld [vmem:[#allocation2 + $0x68] sm:$0xff]
    %v57 = vld [vmem:[#allocation2 + $0x70] sm:$0xff]
    %v58 = vld [vmem:[#allocation2 + $0x78] sm:$0xff]
    %v59 = vld [vmem:[#allocation2 + $0x80] sm:$0xff]
    %v60 = vld [vmem:[#allocation2 + $0x88] sm:$0xff]
    %v61 = vld [vmem:[#allocation2 + $0x90] sm:$0xff]
    %v62 = vld [vmem:[#allocation2 + $0x98] sm:$0xff]
    %v63 = vld [vmem:[#allocation2 + $0xa0] sm:$0xff]
    %v64 = vld [vmem:[#allocation2 + $0xa8] sm:$0xff]
    %v65 = vld [vmem:[#allocation2 + $0xb0] sm:$0xff]
    %v66 = vld [vmem:[#allocation2 + $0xb8] sm:$0xff]
    %v67 = vld [vmem:[#allocation2 + $0xc0] sm:$0xff]
    %v68 = vld [vmem:[#allocation2 + $0xc8] sm:$0xff]
    %v69 = vld [vmem:[#allocation2 + $0xd0] sm:$0xff]
    %v70 = vld [vmem:[#allocation2 + $0xd8] sm:$0xff]
    %v71 = vld [vmem:[#allocation2 + $0xe0] sm:$0xff]
    %v72 = vld [vmem:[#allocation2 + $0xe8] sm:$0xff]
    %v73 = vld [vmem:[#allocation2 + $0xf0] sm:$0xff]
    %v74 = vld [vmem:[#allocation2 + $0xf8] sm:$0xff]
    %v75 = vld [vmem:[#allocation5] sm:$0xff]
    %v76 = vld [vmem:[#allocation5 + $0x8] sm:$0xff]
    %v77 = vld [vmem:[#allocation5 + $0x10] sm:$0xff]
    %v78 = vld [vmem:[#allocation5 + $0x18] sm:$0xff]
    %v79 = vld [vmem:[#allocation5 + $0x20] sm:$0xff]
    %v80 = vld [vmem:[#allocation5 + $0x28] sm:$0xff]
    %v81 = vld [vmem:[#allocation5 + $0x30] sm:$0xff]
    %v82 = vld [vmem:[#allocation5 + $0x38] sm:$0xff]
    %v83 = vld [vmem:[#allocation5 + $0x40] sm:$0xff]
    %v84 = vld [vmem:[#allocation5 + $0x48] sm:$0xff]
    %v85 = vld [vmem:[#allocation5 + $0x50] sm:$0xff]
    %v86 = vld [vmem:[#allocation5 + $0x58] sm:$0xff]
    %v87 = vld [vmem:[#allocation5 + $0x60] sm:$0xff]
    %v88 = vld [vmem:[#allocation5 + $0x68] sm:$0xff]
    %v89 = vld [vmem:[#allocation5 + $0x70] sm:$0xff]
    %v90 = vld [vmem:[#allocation5 + $0x78] sm:$0xff]
    %v91 = vld [vmem:[#allocation5 + $0x80] sm:$0xff]
    %v92 = vld [vmem:[#allocation5 + $0x88] sm:$0xff]
    %v93 = vld [vmem:[#allocation5 + $0x90] sm:$0xff]
    %v94 = vld [vmem:[#allocation5 + $0x98] sm:$0xff]
    %v95 = vld [vmem:[#allocation5 + $0xa0] sm:$0xff]
    %v96 = vld [vmem:[#allocation5 + $0xa8] sm:$0xff]
    %v97 = vld [vmem:[#allocation5 + $0xb0] sm:$0xff]
    %v98 = vld [vmem:[#allocation5 + $0xb8] sm:$0xff]
    %v99 = vld [vmem:[#allocation5 + $0xc0] sm:$0xff]
    %v100 = vld [vmem:[#allocation5 + $0xc8] sm:$0xff]
    %v101 = vld [vmem:[#allocation5 + $0xd0] sm:$0xff]
    %v102 = vld [vmem:[#allocation5 + $0xd8] sm:$0xff]
    %v103 = vld [vmem:[#allocation5 + $0xe0] sm:$0xff]
    %v104 = vld [vmem:[#allocation5 + $0xe8] sm:$0xff]
    %v105 = vld [vmem:[#allocation5 + $0xf0] sm:$0xff]
    %v106 = vld [vmem:[#allocation5 + $0xf8] sm:$0xff]
    %v107 = vld [vmem:[#allocation5 + $0x100] sm:$0xff]
    %v108 = vld [vmem:[#allocation5 + $0x108] sm:$0xff]
    %v109 = vld [vmem:[#allocation5 + $0x110] sm:$0xff]
    %v110 = vld [vmem:[#allocation5 + $0x118] sm:$0xff]
    %v111 = vld [vmem:[#allocation5 + $0x120] sm:$0xff]
    %v112 = vld [vmem:[#allocation5 + $0x128] sm:$0xff]
    %v113 = vld [vmem:[#allocation5 + $0x130] sm:$0xff]
    %v114 = vld [vmem:[#allocation5 + $0x138] sm:$0xff]
    %v115 = vld [vmem:[#allocation5 + $0x140] sm:$0xff]
    %v116 = vld [vmem:[#allocation5 + $0x148] sm:$0xff]
    %v117 = vld [vmem:[#allocation5 + $0x150] sm:$0xff]
    %v118 = vld [vmem:[#allocation5 + $0x158] sm:$0xff]
    %v119 = vld [vmem:[#allocation5 + $0x160] sm:$0xff]
    %v120 = vld [vmem:[#allocation5 + $0x168] sm:$0xff]
    %v121 = vld [vmem:[#allocation5 + $0x170] sm:$0xff]
    %v122 = vld [vmem:[#allocation5 + $0x178] sm:$0xff]
    %v123 = vld [vmem:[#allocation5 + $0x180] sm:$0xff]
    %v124 = vld [vmem:[#allocation5 + $0x188] sm:$0xff]
    %v125 = vld [vmem:[#allocation5 + $0x190] sm:$0xff]
    %v126 = vld [vmem:[#allocation5 + $0x198] sm:$0xff]
    %v127 = vld [vmem:[#allocation5 + $0x1a0] sm:$0xff]
    %v128 = vld [vmem:[#allocation5 + $0x1a8] sm:$0xff]
    %v129 = vld [vmem:[#allocation5 + $0x1b0] sm:$0xff]
    %v130 = vld [vmem:[#allocation5 + $0x1b8] sm:$0xff]
    %v131 = vld [vmem:[#allocation5 + $0x1c0] sm:$0xff]
    %v132 = vld [vmem:[#allocation5 + $0x1c8] sm:$0xff]
    %v133 = vld [vmem:[#allocation5 + $0x1d0] sm:$0xff]
    %v134 = vld [vmem:[#allocation5 + $0x1d8] sm:$0xff]
    %v135 = vld [vmem:[#allocation5 + $0x1e0] sm:$0xff]
    %v136 = vld [vmem:[#allocation5 + $0x1e8] sm:$0xff]
    %v137 = vld [vmem:[#allocation5 + $0x1f0] sm:$0xff]
    %v138 = vld [vmem:[#allocation5 + $0x1f8] sm:$0xff]
    %v139 = vld [vmem:[%s2] sm:$0x1]
    %v141 = vlaneseq
    %v142 = vshrl.u32 %v141, 7
    %v143 = vsub.s32 0, %v142
    %v144 = vrot.slane %v139, %v143
    %146 = vmatprep.subr.mxu0 0.0
    %147 = vmatpush1.msra.mxu0 %v75
    %148 = vmatprep.subr.mxu0 0.0
    %149 = vmatpush1.msra.mxu0 %v76
    %150 = vmatprep.subr.mxu0 0.0
    %151 = vmatpush1.msra.mxu0 %v77
    %152 = vmatprep.subr.mxu0 0.0
    %153 = vmatpush1.msra.mxu0 %v78
    %154 = vmatprep.subr.mxu0 0.0
    %155 = vmatpush1.msra.mxu0 %v79
    %156 = vmatprep.subr.mxu0 0.0
    %157 = vmatpush1.msra.mxu0 %v80
    %158 = vmatprep.subr.mxu0 0.0
    %159 = vmatpush1.msra.mxu0 %v81
    %160 = vmatprep.subr.mxu0 0.0
    %161 = vmatpush1.msra.mxu0 %v82
    %162 = vmatprep.subr.mxu0 0.0
    %163 = vmatpush1.msra.mxu0 %v83
    %164 = vmatprep.subr.mxu0 0.0
    %165 = vmatpush1.msra.mxu0 %v84
    %166 = vmatprep.subr.mxu0 0.0
    %167 = vmatpush1.msra.mxu0 %v85
    %168 = vmatprep.subr.mxu0 0.0
    %169 = vmatpush1.msra.mxu0 %v86
    %170 = vmatprep.subr.mxu0 0.0
    %171 = vmatpush1.msra.mxu0 %v87
    %172 = vmatprep.subr.mxu0 0.0
    %173 = vmatpush1.msra.mxu0 %v88
    %174 = vmatprep.subr.mxu0 0.0
    %175 = vmatpush1.msra.mxu0 %v89
    %176 = vmatprep.subr.mxu0 0.0
    %177 = vmatpush1.msra.mxu0 %v90
    %178 = vmatprep.subr.mxu0 0.0
    %179 = vmatpush1.msra.mxu0 %v91
    %180 = vmatprep.subr.mxu0 0.0
    %181 = vmatpush1.msra.mxu0 %v92
    %182 = vmatprep.subr.mxu0 0.0
    %183 = vmatpush1.msra.mxu0 %v93
    %184 = vmatprep.subr.mxu0 0.0
    %185 = vmatpush1.msra.mxu0 %v94
    %186 = vmatprep.subr.mxu0 0.0
    %187 = vmatpush1.msra.mxu0 %v95
    %188 = vmatprep.subr.mxu0 0.0
    %189 = vmatpush1.msra.mxu0 %v96
    %190 = vmatprep.subr.mxu0 0.0
    %191 = vmatpush1.msra.mxu0 %v97
    %192 = vmatprep.subr.mxu0 0.0
    %193 = vmatpush1.msra.mxu0 %v98
    %194 = vmatprep.subr.mxu0 0.0
    %195 = vmatpush1.msra.mxu0 %v99
    %196 = vmatprep.subr.mxu0 0.0
    %197 = vmatpush1.msra.mxu0 %v100
    %198 = vmatprep.subr.mxu0 0.0
    %199 = vmatpush1.msra.mxu0 %v101
    %200 = vmatprep.subr.mxu0 0.0
    %201 = vmatpush1.msra.mxu0 %v102
    %202 = vmatprep.subr.mxu0 0.0
    %203 = vmatpush1.msra.mxu0 %v103
    %204 = vmatprep.subr.mxu0 0.0
    %205 = vmatpush1.msra.mxu0 %v104
    %206 = vmatprep.subr.mxu0 0.0
    %207 = vmatpush1.msra.mxu0 %v105
    %208 = vmatprep.subr.mxu0 0.0
    %209 = vmatpush1.msra.mxu0 %v106
    %210 = vmatprep.mubr.f32.mxu0 %v44
    %211 = vmatmul.mubr.f32.gmra.mrb[0].mxu0 %v43
    %v212 = vpop.f32.mrb[0].mxu0
    %v213 = vadd.f32 %v144, %v212
    %v214 = vpop.f32.mrb[0].mxu0
    %215 = vmatprep.mubr.f32.mxu0 %v48
    %216 = vmatmul.mubr.f32.gmra.mrb[0].mxu0 %v47
    %v217 = vpop.f32.mrb[0].mxu0
    %v218 = vadd.f32 %v144, %v217
    %v219 = vpop.f32.mrb[0].mxu0
    %220 = vmatprep.mubr.f32.mxu0 %v52
    %221 = vmatmul.mubr.f32.gmra.mrb[0].mxu0 %v51
    %v222 = vpop.f32.mrb[0].mxu0
    %v223 = vadd.f32 %v144, %v222
    %v224 = vpop.f32.mrb[0].mxu0
    %225 = vmatprep.mubr.f32.mxu0 %v56
    %226 = vmatmul.mubr.f32.gmra.mrb[0].mxu0 %v55
    %v227 = vpop.f32.mrb[0].mxu0
    %v228 = vadd.f32 %v144, %v227
    %v229 = vpop.f32.mrb[0].mxu0
    %230 = vmatprep.mubr.f32.mxu0 %v60
    %231 = vmatmul.mubr.f32.gmra.mrb[0].mxu0 %v59
    %v232 = vpop.f32.mrb[0].mxu0
    %v233 = vadd.f32 %v144, %v232
    %v234 = vpop.f32.mrb[0].mxu0
    %235 = vmatprep.mubr.f32.mxu0 %v64
    %236 = vmatmul.mubr.f32.gmra.mrb[0].mxu0 %v63
    %v237 = vpop.f32.mrb[0].mxu0
    %v238 = vadd.f32 %v144, %v237
    %v239 = vpop.f32.mrb[0].mxu0
    %240 = vmatprep.mubr.f32.mxu0 %v68
    %241 = vmatmul.mubr.f32.gmra.mrb[0].mxu0 %v67
    %v242 = vpop.f32.mrb[0].mxu0
    %v243 = vadd.f32 %v144, %v242
    %v244 = vpop.f32.mrb[0].mxu0
    %245 = vmatprep.mubr.f32.mxu0 %v72
    %246 = vmatmul.mubr.f32.gmra.mrb[0].mxu0 %v71
    %v247 = vpop.f32.mrb[0].mxu0
    %v248 = vadd.f32 %v144, %v247
    %v249 = vpop.f32.mrb[0].mxu0
    %250 = vdwg.mxu0
    %251 = vmatprep.subr.mxu0 0.0
    %252 = vmatpush1.msra.mxu0 %v107
    %253 = vmatprep.subr.mxu0 0.0
    %254 = vmatpush1.msra.mxu0 %v108
    %255 = vmatprep.subr.mxu0 0.0
    %256 = vmatpush1.msra.mxu0 %v109
    %257 = vmatprep.subr.mxu0 0.0
    %258 = vmatpush1.msra.mxu0 %v110
    %259 = vmatprep.subr.mxu0 0.0
    %260 = vmatpush1.msra.mxu0 %v111
    %261 = vmatprep.subr.mxu0 0.0
    %262 = vmatpush1.msra.mxu0 %v112
    %263 = vmatprep.subr.mxu0 0.0
    %264 = vmatpush1.msra.mxu0 %v113
    %265 = vmatprep.subr.mxu0 0.0
    %266 = vmatpush1.msra.mxu0 %v114
    %267 = vmatprep.subr.mxu0 0.0
    %268 = vmatpush1.msra.mxu0 %v115
    %269 = vmatprep.subr.mxu0 0.0
    %270 = vmatpush1.msra.mxu0 %v116
    %271 = vmatprep.subr.mxu0 0.0
    %272 = vmatpush1.msra.mxu0 %v117
    %273 = vmatprep.subr.mxu0 0.0
    %274 = vmatpush1.msra.mxu0 %v118
    %275 = vmatprep.subr.mxu0 0.0
    %276 = vmatpush1.msra.mxu0 %v119
    %277 = vmatprep.subr.mxu0 0.0
    %278 = vmatpush1.msra.mxu0 %v120
    %279 = vmatprep.subr.mxu0 0.0
    %280 = vmatpush1.msra.mxu0 %v121
    %281 = vmatprep.subr.mxu0 0.0
    %282 = vmatpush1.msra.mxu0 %v122
    %283 = vmatprep.subr.mxu0 0.0
    %284 = vmatpush1.msra.mxu0 %v123
    %285 = vmatprep.subr.mxu0 0.0
    %286 = vmatpush1.msra.mxu0 %v124
    %287 = vmatprep.subr.mxu0 0.0
    %288 = vmatpush1.msra.mxu0 %v125
    %289 = vmatprep.subr.mxu0 0.0
    %290 = vmatpush1.msra.mxu0 %v126
    %291 = vmatprep.subr.mxu0 0.0
    %292 = vmatpush1.msra.mxu0 %v127
    %293 = vmatprep.subr.mxu0 0.0
    %294 = vmatpush1.msra.mxu0 %v128
    %295 = vmatprep.subr.mxu0 0.0
    %296 = vmatpush1.msra.mxu0 %v129
    %297 = vmatprep.subr.mxu0 0.0
    %298 = vmatpush1.msra.mxu0 %v130
    %299 = vmatprep.subr.mxu0 0.0
    %300 = vmatpush1.msra.mxu0 %v131
    %301 = vmatprep.subr.mxu0 0.0
    %302 = vmatpush1.msra.mxu0 %v132
    %303 = vmatprep.subr.mxu0 0.0
    %304 = vmatpush1.msra.mxu0 %v133
    %305 = vmatprep.subr.mxu0 0.0
    %306 = vmatpush1.msra.mxu0 %v134
    %307 = vmatprep.subr.mxu0 0.0
    %308 = vmatpush1.msra.mxu0 %v135
    %309 = vmatprep.subr.mxu0 0.0
    %310 = vmatpush1.msra.mxu0 %v136
    %311 = vmatprep.subr.mxu0 0.0
    %312 = vmatpush1.msra.mxu0 %v137
    %313 = vmatprep.subr.mxu0 0.0
    %314 = vmatpush1.msra.mxu0 %v138
    %315 = vmatprep.mubr.f32.mxu0 %v46
    %316 = vmatmul.mubr.f32.gmra.mrb[0].mxu0 %v45
    %v317 = vpop.f32.mrb[0].mxu0
    %v318 = vadd.f32 %v213, %v317
    %v319 = vpop.f32.mrb[0].mxu0
    %320 = vmatprep.mubr.f32.mxu0 %v50
    %321 = vmatmul.mubr.f32.gmra.mrb[0].mxu0 %v49
    %v322 = vpop.f32.mrb[0].mxu0
    %v323 = vadd.f32 %v218, %v322
    %v324 = vpop.f32.mrb[0].mxu0
    %325 = vmatprep.mubr.f32.mxu0 %v54
    %326 = vmatmul.mubr.f32.gmra.mrb[0].mxu0 %v53
    %v327 = vpop.f32.mrb[0].mxu0
    %v328 = vadd.f32 %v223, %v327
    %v329 = vpop.f32.mrb[0].mxu0
    %330 = vmatprep.mubr.f32.mxu0 %v58
    %331 = vmatmul.mubr.f32.gmra.mrb[0].mxu0 %v57
    %v332 = vpop.f32.mrb[0].mxu0
    %v333 = vadd.f32 %v228, %v332
    %v334 = vpop.f32.mrb[0].mxu0
    %335 = vmatprep.mubr.f32.mxu0 %v62
    %336 = vmatmul.mubr.f32.gmra.mrb[0].mxu0 %v61
    %v337 = vpop.f32.mrb[0].mxu0
    %v338 = vadd.f32 %v233, %v337
    %v339 = vpop.f32.mrb[0].mxu0
    %340 = vmatprep.mubr.f32.mxu0 %v66
    %341 = vmatmul.mubr.f32.gmra.mrb[0].mxu0 %v65
    %v342 = vpop.f32.mrb[0].mxu0
    %v343 = vadd.f32 %v238, %v342
    %v344 = vpop.f32.mrb[0].mxu0
    %345 = vmatprep.mubr.f32.mxu0 %v70
    %346 = vmatmul.mubr.f32.gmra.mrb[0].mxu0 %v69
    %v347 = vpop.f32.mrb[0].mxu0
    %v348 = vadd.f32 %v243, %v347
    %v349 = vpop.f32.mrb[0].mxu0
    %350 = vmatprep.mubr.f32.mxu0 %v74
    %351 = vmatmul.mubr.f32.gmra.mrb[0].mxu0 %v73
    %v352 = vpop.f32.mrb[0].mxu0
    %v353 = vadd.f32 %v248, %v352
    %v354 = vpop.f32.mrb[0].mxu0
    %355 = vdwg.mxu0
    %356 = vst [vmem:[#allocation7] sm:$0xff] %v318
    %357 = vst [vmem:[#allocation7 + $0x8] sm:$0xff] %v323
    %358 = vst [vmem:[#allocation7 + $0x10] sm:$0xff] %v328
    %359 = vst [vmem:[#allocation7 + $0x18] sm:$0xff] %v333
    %360 = vst [vmem:[#allocation7 + $0x20] sm:$0xff] %v338
    %361 = vst [vmem:[#allocation7 + $0x28] sm:$0xff] %v343
    %362 = vst [vmem:[#allocation7 + $0x30] sm:$0xff] %v348
    %363 = vst [vmem:[#allocation7 + $0x38] sm:$0xff] %v353
    // Predicated region
    $region22: #{tpu_custom_call.1} parent=1 // pred_check
      _
    $region23: #{tpu_custom_call.1} parent=1 // pred_check_branch
      %365 = sbr.rel (0) target = $region25
    $region24: #{tpu_custom_call.1} parent=1 // pred_region
      %s367 = ssub.s32 1024, 1024
      %368 = vsyncadd [#allocation4], %s367
      %s369 = sshll.u32 [#allocation7], 4
      %s370 = int_to_ptr.vmem [resolvable:$true] %s369
      %375 = dma.vmem_to_hbm [thread:$0]  %s370, 1024, %s3, [#allocation4], 128, 128, 8
    $region25: #{tpu_custom_call.1} parent=1 // pred_fallthru
      _
    // Predicated region
    $region26: #{tpu_custom_call.1} parent=1 // pred_check
      _
    $region27: #{tpu_custom_call.1} parent=1 // pred_check_branch
      %377 = sbr.rel (0) target = $region29
    $region28: #{tpu_custom_call.1} parent=1 // pred_region
      %378 = dma.done [#allocation4], 1024
    $region29: #{tpu_custom_call.1} parent=1 // pred_fallthru
      _
    %379 = vsyncpa [#allocation3], 1
    %380 = vsyncpa [#allocation6], 1
    %381 = vsyncpa [#allocation4], 1

</llo_original>
